<compile_context>
chip_gen: v7x
topology: tpu7x:2x2x1
jax: 0.10.0
libtpu: 0.0.40
codegen_flags: <defaults>
</compile_context>

<pallas_src>
import jax
import jax.numpy as jnp
from jax.experimental import pallas as pl
from jax.experimental.pallas import tpu as pltpu


def _round_up(a, m):
    return (a + m - 1) // m * m


def _vmem_capacity_bytes():
    try:
        return int(pltpu.get_tpu_info().vmem_capacity_bytes)
    except Exception:
        return 64 * 1024 * 1024  # v7x per-TC capacity = safe lower bound


def _num_tensorcores():
    # Best-effort query; defaults to 1 (single-TC behavior) if unknown.
    try:
        info = pltpu.get_tpu_info()
        for name in ("num_cores", "core_count", "num_tensorcores",
                     "tensorcore_count", "cores_per_chip"):
            v = getattr(info, name, None)
            if isinstance(v, int) and v > 0:
                return v
    except Exception:
        pass
    return 1


def _block_vmem_bytes(rows, cols, dtype):
    """VMEM footprint of one (rows, cols) block after (8,128) tiling/padding."""
    itemsize = jnp.dtype(dtype).itemsize
    sublane = 8 * max(1, 4 // max(1, itemsize))  # sub-32-bit packs along sublanes
    return _round_up(rows, sublane) * _round_up(cols, 128) * itemsize


def _allocation_kernel(x_ref, w_ref, b_ref, o_ref):
    # x_ref: (TM, K)   -- batch tile, features on lanes (as stored in HBM)
    # w_ref: (B+1, K)  -- full weight (PyTorch layout), grid-resident
    # b_ref: (B+1, 1)  -- bias column (f32), grid-resident
    # o_ref: (B, TM)   -- lane-dense transposed output tile
    logits = jnp.einsum(
        "ok,nk->on", w_ref[...], x_ref[...],
        preferred_element_type=jnp.float32,
    ) + b_ref[...]                               # (B+1, TM), f32

    m = jnp.max(logits, axis=0, keepdims=True)   # (1, TM) numerically stable
    e = jnp.exp(logits - m)                      # (B+1, TM)
    denom = jnp.sum(e, axis=0, keepdims=True)    # (1, TM)
    probs = e / denom                            # exact; denom is tiny vs DMA

    bidders = o_ref.shape[0]
    o_ref[...] = probs[:bidders, :].astype(o_ref.dtype)


def allocation_forward(x, w, b, *, tm=4096, transposed_output=False):
    """Allocation forward pass.

    x: (N, in_features)              float32 or bfloat16
    w: (bidders+1, in_features)      (PyTorch nn.Linear weight layout)
    b: (bidders+1,)                  (PyTorch nn.Linear bias)
    returns: (N, bidders) = softmax(x @ w.T + b, axis=1)[:, :bidders]
             (or its (bidders, N) transpose when transposed_output=True)
    """
    N, K = x.shape
    bp1 = w.shape[0]
    bidders = bp1 - 1

    # --- batch tile selection ------------------------------------------------
    n128 = _round_up(max(N, 1), 128)
    tm_eff = max(128, min(_round_up(tm, 128), n128))

    # Split into >=2 grid steps only when the chip actually has 2 TensorCores;
    # on single-TC chips it is pure per-step overhead.
    if _num_tensorcores() >= 2 and n128 >= 256 and pl.cdiv(N, tm_eff) < 2:
        tm_eff = _round_up(n128 // 2, 128)

    cap = _vmem_capacity_bytes()

    def tile_bytes(t):
        # double-buffered x tile + out tile, plus (double-counted, tiny) W/bias
        return (2 * (_block_vmem_bytes(t, K, x.dtype)
                     + _block_vmem_bytes(bidders, t, x.dtype))
                + 2 * (_block_vmem_bytes(bp1, K, w.dtype)
                       + _block_vmem_bytes(bp1, 1, jnp.float32)))

    while tm_eff > 128 and tile_bytes(tm_eff) > int(0.7 * cap):
        tm_eff = max(128, _round_up(tm_eff // 2, 128))

    grid = (pl.cdiv(N, tm_eff),)

    vmem_limit = int(min(int(0.9 * cap),
                         max(32 * 1024 * 1024, 2 * tile_bytes(tm_eff))))

    b_col = b.reshape(bp1, 1).astype(jnp.float32)

    itemsize = jnp.dtype(x.dtype).itemsize
    cost = pl.CostEstimate(
        flops=int(2 * N * K * bp1 + 6 * N * bp1),
        transcendentals=int(N * bp1),
        bytes_accessed=int((N * K + bp1 * K) * itemsize
                           + bp1 * 4
                           + N * bidders * itemsize),
    )

    out_t = pl.pallas_call(
        _allocation_kernel,
        out_shape=jax.ShapeDtypeStruct((bidders, N), x.dtype),
        grid_spec=pltpu.PrefetchScalarGridSpec(
            num_scalar_prefetch=0,
            grid=grid,
            in_specs=[
                pl.BlockSpec((tm_eff, K), lambda i: (i, 0)),   # x batch tile
                pl.BlockSpec((bp1, K), lambda i: (0, 0)),      # full W (resident)
                pl.BlockSpec((bp1, 1), lambda i: (0, 0)),      # bias   (resident)
            ],
            out_specs=pl.BlockSpec((bidders, tm_eff), lambda i: (0, i)),
        ),
        compiler_params=pltpu.CompilerParams(
            dimension_semantics=("parallel",),
            vmem_limit_bytes=vmem_limit,
        ),
        cost_estimate=cost,
    )(x, w, b_col)

    if transposed_output:
        return out_t          # (bidders, N) lane-dense layout, no XLA transpose
    return out_t.T            # PyTorch layout (N, bidders); tiny XLA transpose


def reference_forward(x, w, b):
    logits = jnp.dot(x, w.T, precision=jax.lax.Precision.HIGHEST) + b
    probs = jax.nn.softmax(logits, axis=1)
    return probs[:, : w.shape[0] - 1]


if __name__ == "__main__":
    # Small shapes consistent with the module: N=256, in_features=32, bidders=8
    N, in_features, bidders = 256, 32, 8

    key = jax.random.PRNGKey(0)
    kx, kw, kb = jax.random.split(key, 3)

    # Parameter init mirroring torch.nn.Linear default:
    # U(-1/sqrt(in_features), 1/sqrt(in_features)) for weight and bias.
    bound = 1.0 / (in_features ** 0.5)
    w = jax.random.uniform(
        kw, (bidders + 1, in_features), jnp.float32, -bound, bound
    )  # PyTorch layout (out_features, in_features)
    b = jax.random.uniform(kb, (bidders + 1,), jnp.float32, -bound, bound)

    x = jax.random.normal(kx, (N, in_features), jnp.float32)

    out = allocation_forward(x, w, b)
    out = jax.block_until_ready(out)

    ref = reference_forward(x, w, b)
    assert out.shape == (N, bidders)
    # Exact softmax normalization in-kernel -> tight tolerance vs f32 reference.
    assert jnp.allclose(out, ref, atol=1e-4, rtol=1e-4), "mismatch vs reference"

    print("KERNEL_OK")
</pallas_src>

<mosaic_0001>
module attributes {stable_mosaic.version = 11 : i64} {
  func.func @_allocation_kernel(%arg0: i32, %arg1: memref<256x32xf32, #tpu.memory_space<vmem>>, %arg2: memref<9x32xf32, #tpu.memory_space<vmem>>, %arg3: memref<9x1xf32, #tpu.memory_space<vmem>>, %arg4: memref<8x256xf32, #tpu.memory_space<vmem>>) attributes {dimension_semantics = [#tpu.dimension_semantics<parallel>], iteration_bounds = array<i64: 1>, scalar_prefetch = 0 : i64, scratch_operands = 0 : i64, tpu.core_type = #tpu.core_type<tc>, window_params = [{transform_indices = @transform_0, window_bounds = array<i64: 256, 32>}, {pipeline_mode = #tpu.pipeline_mode<synchronous>, transform_indices = @transform_1, window_bounds = array<i64: 9, 32>}, {pipeline_mode = #tpu.pipeline_mode<synchronous>, transform_indices = @transform_2, window_bounds = array<i64: 9, 1>}, {transform_indices = @transform_3, window_bounds = array<i64: 8, 256>}]} {
    %c0 = arith.constant 0 : index
    %c0_0 = arith.constant 0 : index
    %0 = vector.load %arg2[%c0, %c0_0] : memref<9x32xf32, #tpu.memory_space<vmem>>, vector<9x32xf32>
    %c0_1 = arith.constant 0 : index
    %c0_2 = arith.constant 0 : index
    %1 = vector.load %arg1[%c0_1, %c0_2] : memref<256x32xf32, #tpu.memory_space<vmem>>, vector<256x32xf32>
    "tpu.trace_start"() <{level = 10 : i32, message = "ok,nk->on"}> : () -> ()
    %cst = arith.constant dense<0.000000e+00> : vector<9x256xf32>
    %2 = tpu.matmul %0, %1, %cst {dimension_numbers = #tpu.dot_dimension_numbers<[1], [1], [0], [0], [0, 0, 1, 0], [], []>} : vector<9x32xf32>, vector<256x32xf32>, vector<9x256xf32> -> vector<9x256xf32>
    "tpu.trace_stop"() : () -> ()
    %c0_3 = arith.constant 0 : index
    %c0_4 = arith.constant 0 : index
    %3 = vector.load %arg3[%c0_3, %c0_4] : memref<9x1xf32, #tpu.memory_space<vmem>>, vector<9x1xf32>
    %4 = vector.broadcast %3 : vector<9x1xf32> to vector<9x256xf32>
    %5 = arith.addf %2, %4 : vector<9x256xf32>
    %cst_5 = arith.constant dense<0xFF800000> : vector<256xf32>
    %6 = vector.multi_reduction <maximumf>, %5, %cst_5 [0] : vector<9x256xf32> to vector<256xf32>
    %7 = vector.shape_cast %6 : vector<256xf32> to vector<1x256xf32>
    %8 = vector.broadcast %7 : vector<1x256xf32> to vector<9x256xf32>
    %9 = arith.subf %5, %8 : vector<9x256xf32>
    %10 = math.exp %9 : vector<9x256xf32>
    %cst_6 = arith.constant dense<0.000000e+00> : vector<256xf32>
    %11 = vector.multi_reduction <add>, %10, %cst_6 [0] : vector<9x256xf32> to vector<256xf32>
    %12 = vector.shape_cast %11 : vector<256xf32> to vector<1x256xf32>
    %13 = vector.broadcast %12 : vector<1x256xf32> to vector<9x256xf32>
    %14 = arith.divf %10, %13 : vector<9x256xf32>
    %15 = vector.extract_strided_slice %14 {offsets = [0, 0], sizes = [8, 256], strides = [1, 1]} : vector<9x256xf32> to vector<8x256xf32>
    %c0_7 = arith.constant 0 : index
    %c0_8 = arith.constant 0 : index
    %16 = vector.load %arg4[%c0_7, %c0_8] : memref<8x256xf32, #tpu.memory_space<vmem>>, vector<8x256xf32>
    tpu.vector_store %arg4[%c0_7, %c0_8], %15 {strides = array<i32>} : memref<8x256xf32, #tpu.memory_space<vmem>>, vector<8x256xf32>,
    return
  }
  func.func @transform_0(%arg0: i32) -> (i32, i32) {
    %c0_i32 = arith.constant 0 : i32
    %c0_i32_0 = arith.constant 0 : i32
    return %arg0, %c0_i32 : i32, i32
  }
  func.func @transform_1(%arg0: i32) -> (i32, i32) {
    %c0_i32 = arith.constant 0 : i32
    %c0_i32_0 = arith.constant 0 : i32
    %c0_i32_1 = arith.constant 0 : i32
    return %c0_i32, %c0_i32_0 : i32, i32
  }
  func.func @transform_2(%arg0: i32) -> (i32, i32) {
    %c0_i32 = arith.constant 0 : i32
    %c0_i32_0 = arith.constant 0 : i32
    %c0_i32_1 = arith.constant 0 : i32
    return %c0_i32, %c0_i32_0 : i32, i32
  }
  func.func @transform_3(%arg0: i32) -> (i32, i32) {
    %c0_i32 = arith.constant 0 : i32
    %c0_i32_0 = arith.constant 0 : i32
    return %c0_i32, %arg0 : i32, i32
  }
}

</mosaic_0001>

<llo_original>
// kernel: tpu_custom_call.1
$region0: #{tpu_custom_call.1}
  #allocation0 [shape = 'u32[]', space=smem, size = 0x4, offset = 0x4, fixed_abs, tag = 'smem constant byte address 0x4 - core index']
  #allocation1 [shape = 'u32[144,128]{1,0:T(1,128)}', space=vmem, size = 0x12000, scoped, tag = 'internal scratch']
  %s0 = inlined_call_operand.vmem [shape: f32[256,32], index: 0, kind: input, shape index: {}]
  %s1 = inlined_call_operand.vmem [shape: f32[9,32], index: 1, kind: input, shape index: {}]
  %s2 = inlined_call_operand.vmem [shape: f32[9,1], index: 2, kind: input, shape index: {}]
  %s3 = inlined_call_operand.hbm [shape: f32[8,256], index: 3, kind: output, shape index: {}]
  %s4 = sld [smem:[#allocation0]]
  $region22: #{tpu_custom_call.1} parent=0
    _
  %s6 = ssub.s32 1, %s4
  %s7 = scalar_select 0, %s6, %s4
  $region1: #{tpu_custom_call.1} parent=0
    #allocation2 [shape = 'u8[8192]{0}', space=vmem, size = 0x2000, scoped, tag = 'output window, operand 0, single buffered']
    #allocation3 [shape = 's32[1]{0}', space=sflag, size = 0x4, scoped, tag = 'scoped memory for tpu_custom_call.1']
    %8 = vsyncpa [#allocation3], 0
    // Predicated region
    $region2: #{tpu_custom_call.1} parent=1 // pred_check
      _
    $region3: #{tpu_custom_call.1} parent=1 // pred_check_branch
      %10 = sbr.rel (0) target = $region5
    $region4: #{tpu_custom_call.1} parent=1 // pred_region
      _
    $region5: #{tpu_custom_call.1} parent=1 // pred_fallthru
      _
    // Predicated region
    $region6: #{tpu_custom_call.1} parent=1 // pred_check
      _
    $region7: #{tpu_custom_call.1} parent=1 // pred_check_branch
      %12 = sbr.rel (0) target = $region9
    $region8: #{tpu_custom_call.1} parent=1 // pred_region
      _
    $region9: #{tpu_custom_call.1} parent=1 // pred_fallthru
      _
    // Predicated region
    $region10: #{tpu_custom_call.1} parent=1 // pred_check
      _
    $region11: #{tpu_custom_call.1} parent=1 // pred_check_branch
      %14 = sbr.rel (0) target = $region13
    $region12: #{tpu_custom_call.1} parent=1 // pred_region
      _
    $region13: #{tpu_custom_call.1} parent=1 // pred_fallthru
      _
    %v15 = vld [vmem:[%s1] sm:$0xff]
    %v16 = vld [vmem:[%s1 + $0x8] sm:$0x1]
    %v17 = vld [vmem:[%s0] sm:$0xff]
    %v18 = vld [vmem:[%s0 + $0x8] sm:$0xff]
    %v19 = vld [vmem:[%s0 + $0x10] sm:$0xff]
    %v20 = vld [vmem:[%s0 + $0x18] sm:$0xff]
    %v21 = vld [vmem:[%s0 + $0x20] sm:$0xff]
    %v22 = vld [vmem:[%s0 + $0x28] sm:$0xff]
    %v23 = vld [vmem:[%s0 + $0x30] sm:$0xff]
    %v24 = vld [vmem:[%s0 + $0x38] sm:$0xff]
    %v25 = vld [vmem:[%s0 + $0x40] sm:$0xff]
    %v26 = vld [vmem:[%s0 + $0x48] sm:$0xff]
    %v27 = vld [vmem:[%s0 + $0x50] sm:$0xff]
    %v28 = vld [vmem:[%s0 + $0x58] sm:$0xff]
    %v29 = vld [vmem:[%s0 + $0x60] sm:$0xff]
    %v30 = vld [vmem:[%s0 + $0x68] sm:$0xff]
    %v31 = vld [vmem:[%s0 + $0x70] sm:$0xff]
    %v32 = vld [vmem:[%s0 + $0x78] sm:$0xff]
    %v33 = vld [vmem:[%s0 + $0x80] sm:$0xff]
    %v34 = vld [vmem:[%s0 + $0x88] sm:$0xff]
    %v35 = vld [vmem:[%s0 + $0x90] sm:$0xff]
    %v36 = vld [vmem:[%s0 + $0x98] sm:$0xff]
    %v37 = vld [vmem:[%s0 + $0xa0] sm:$0xff]
    %v38 = vld [vmem:[%s0 + $0xa8] sm:$0xff]
    %v39 = vld [vmem:[%s0 + $0xb0] sm:$0xff]
    %v40 = vld [vmem:[%s0 + $0xb8] sm:$0xff]
    %v41 = vld [vmem:[%s0 + $0xc0] sm:$0xff]
    %v42 = vld [vmem:[%s0 + $0xc8] sm:$0xff]
    %v43 = vld [vmem:[%s0 + $0xd0] sm:$0xff]
    %v44 = vld [vmem:[%s0 + $0xd8] sm:$0xff]
    %v45 = vld [vmem:[%s0 + $0xe0] sm:$0xff]
    %v46 = vld [vmem:[%s0 + $0xe8] sm:$0xff]
    %v47 = vld [vmem:[%s0 + $0xf0] sm:$0xff]
    %v48 = vld [vmem:[%s0 + $0xf8] sm:$0xff]
    %v49 = vld [vmem:[%s2] sm:$0xff]
    %v50 = vld [vmem:[%s2 + $0x8] sm:$0x1]
    %52 = vset.pattern.permute.xlu0 0
    %53 = vperm.xlu0 %52, %v49
    %v54 = vpop.permute.xlu0 %53
    %57 = vset.pattern.permute.xlu0 0
    %58 = vperm.xlu0 %57, %v50
    %v59 = vpop.permute.xlu0 %58
    %vm61 = vcmask 261120
    %v63 = vsel %vm61, %v15, 0
    %v66 = vsel %vm61, %v16, 0
    %v69 = vsel %vm61, %v17, 0
    %v72 = vsel %vm61, %v18, 0
    %v75 = vsel %vm61, %v19, 0
    %v78 = vsel %vm61, %v20, 0
    %v81 = vsel %vm61, %v21, 0
    %v84 = vsel %vm61, %v22, 0
    %v87 = vsel %vm61, %v23, 0
    %v90 = vsel %vm61, %v24, 0
    %v93 = vsel %vm61, %v25, 0
    %v96 = vsel %vm61, %v26, 0
    %v99 = vsel %vm61, %v27, 0
    %v102 = vsel %vm61, %v28, 0
    %v105 = vsel %vm61, %v29, 0
    %v108 = vsel %vm61, %v30, 0
    %v111 = vsel %vm61, %v31, 0
    %v114 = vsel %vm61, %v32, 0
    %v117 = vsel %vm61, %v33, 0
    %v120 = vsel %vm61, %v34, 0
    %v123 = vsel %vm61, %v35, 0
    %v126 = vsel %vm61, %v36, 0
    %v129 = vsel %vm61, %v37, 0
    %v132 = vsel %vm61, %v38, 0
    %v135 = vsel %vm61, %v39, 0
    %v138 = vsel %vm61, %v40, 0
    %v141 = vsel %vm61, %v41, 0
    %v144 = vsel %vm61, %v42, 0
    %v147 = vsel %vm61, %v43, 0
    %v150 = vsel %vm61, %v44, 0
    %v153 = vsel %vm61, %v45, 0
    %v156 = vsel %vm61, %v46, 0
    %v159 = vsel %vm61, %v47, 0
    %v162 = vsel %vm61, %v48, 0
    %164 = vmatprep.subr.mxu0 0.0
    %165 = vmatpush1.xpose.msra.mxu0 %v69
    %166 = vmatprep.subr.mxu0 0.0
    %167 = vmatpush1.xpose.msra.mxu0 %v72
    %168 = vmatprep.subr.mxu0 0.0
    %169 = vmatpush1.xpose.msra.mxu0 %v75
    %170 = vmatprep.subr.mxu0 0.0
    %171 = vmatpush1.xpose.msra.mxu0 %v78
    %172 = vmatprep.subr.mxu0 0.0
    %173 = vmatpush1.xpose.msra.mxu0 %v81
    %174 = vmatprep.subr.mxu0 0.0
    %175 = vmatpush1.xpose.msra.mxu0 %v84
    %176 = vmatprep.subr.mxu0 0.0
    %177 = vmatpush1.xpose.msra.mxu0 %v87
    %178 = vmatprep.subr.mxu0 0.0
    %179 = vmatpush1.xpose.msra.mxu0 %v90
    %180 = vmatprep.subr.mxu0 0.0
    %181 = vmatpush1.xpose.msra.mxu0 %v93
    %182 = vmatprep.subr.mxu0 0.0
    %183 = vmatpush1.xpose.msra.mxu0 %v96
    %184 = vmatprep.subr.mxu0 0.0
    %185 = vmatpush1.xpose.msra.mxu0 %v99
    %186 = vmatprep.subr.mxu0 0.0
    %187 = vmatpush1.xpose.msra.mxu0 %v102
    %188 = vmatprep.subr.mxu0 0.0
    %189 = vmatpush1.xpose.msra.mxu0 %v105
    %190 = vmatprep.subr.mxu0 0.0
    %191 = vmatpush1.xpose.msra.mxu0 %v108
    %192 = vmatprep.subr.mxu0 0.0
    %193 = vmatpush1.xpose.msra.mxu0 %v111
    %194 = vmatprep.subr.mxu0 0.0
    %195 = vmatpush1.xpose.msra.mxu0 %v114
    %196 = vmatprep.subr.mxu0 0.0
    %197 = vmatpush1.xpose.msra.mxu0 %v117
    %198 = vmatprep.subr.mxu0 0.0
    %199 = vmatpush1.xpose.msra.mxu0 %v120
    %200 = vmatprep.subr.mxu0 0.0
    %201 = vmatpush1.xpose.msra.mxu0 %v123
    %202 = vmatprep.subr.mxu0 0.0
    %203 = vmatpush1.xpose.msra.mxu0 %v126
    %204 = vmatprep.subr.mxu0 0.0
    %205 = vmatpush1.xpose.msra.mxu0 %v129
    %206 = vmatprep.subr.mxu0 0.0
    %207 = vmatpush1.xpose.msra.mxu0 %v132
    %208 = vmatprep.subr.mxu0 0.0
    %209 = vmatpush1.xpose.msra.mxu0 %v135
    %210 = vmatprep.subr.mxu0 0.0
    %211 = vmatpush1.xpose.msra.mxu0 %v138
    %212 = vmatprep.subr.mxu0 0.0
    %213 = vmatpush1.xpose.msra.mxu0 %v141
    %214 = vmatprep.subr.mxu0 0.0
    %215 = vmatpush1.xpose.msra.mxu0 %v144
    %216 = vmatprep.subr.mxu0 0.0
    %217 = vmatpush1.xpose.msra.mxu0 %v147
    %218 = vmatprep.subr.mxu0 0.0
    %219 = vmatpush1.xpose.msra.mxu0 %v150
    %220 = vmatprep.subr.mxu0 0.0
    %221 = vmatpush1.xpose.msra.mxu0 %v153
    %222 = vmatprep.subr.mxu0 0.0
    %223 = vmatpush1.xpose.msra.mxu0 %v156
    %224 = vmatprep.subr.mxu0 0.0
    %225 = vmatpush1.xpose.msra.mxu0 %v159
    %226 = vmatprep.subr.mxu0 0.0
    %227 = vmatpush1.xpose.msra.mxu0 %v162
    %228 = vmatprep.mubr.f32.mxu0 0.0
    %229 = vmatmul.mubr.f32.gmra.mrb[0].mxu0 %v63
    %v230 = vpop.f32.mrb[0].mxu0
    %v231 = vadd.f32 %v54, %v230
    %v232 = vpop.f32.mrb[0].mxu0
    %v233 = vadd.f32 %v54, %v232
    %234 = vmatprep.mubr.f32.mxu0 0.0
    %235 = vmatmul.mubr.f32.gmra.mrb[0].mxu0 %v66
    %v236 = vpop.f32.mrb[0].mxu0
    %v237 = vadd.f32 %v59, %v236
    %v238 = vpop.f32.mrb[0].mxu0
    %v239 = vadd.f32 %v59, %v238
    %240 = vdwg.mxu0
    %vm241 = vcmask 1040384
    %v242 = vsel %vm241, %v237, -inf
    %v243 = vmax.f32 %v231, %v242
    %v244 = vrot.slane %v243, 4
    %v245 = vmax.f32 %v243, %v244
    %v246 = vrot.slane %v245, 2
    %v247 = vmax.f32 %v245, %v246
    %v248 = vrot.slane %v247, 1
    %v249 = vmax.f32 %v247, %v248
    %v250 = vsel %vm241, %v239, -inf
    %v251 = vmax.f32 %v233, %v250
    %v252 = vrot.slane %v251, 4
    %v253 = vmax.f32 %v251, %v252
    %v254 = vrot.slane %v253, 2
    %v255 = vmax.f32 %v253, %v254
    %v256 = vrot.slane %v255, 1
    %v257 = vmax.f32 %v255, %v256
    %v258 = vsub.f32 %v231, %v249
    %v259 = vsub.f32 %v233, %v257
    %v260 = vsub.f32 %v237, %v249
    %v261 = vsub.f32 %v239, %v257
    %v262 = vmul.f32 %v258, 1.442695
    %v263 = vpow.pop %v262
    %v264 = vmul.f32 %v259, 1.442695
    %v265 = vpow.pop %v264
    %v266 = vmul.f32 %v260, 1.442695
    %v267 = vpow.pop %v266
    %v268 = vmul.f32 %v261, 1.442695
    %v269 = vpow.pop %v268
    %v270 = vsel %vm241, %v267, 0.0
    %v271 = vadd.f32 %v263, %v270
    %v272 = vrot.slane %v271, 4
    %v273 = vadd.f32 %v271, %v272
    %v274 = vrot.slane %v273, 2
    %v275 = vadd.f32 %v273, %v274
    %v276 = vrot.slane %v275, 1
    %v277 = vadd.f32 %v275, %v276
    %v278 = vsel %vm241, %v269, 0.0
    %v279 = vadd.f32 %v265, %v278
    %v280 = vrot.slane %v279, 4
    %v281 = vadd.f32 %v279, %v280
    %v282 = vrot.slane %v281, 2
    %v283 = vadd.f32 %v281, %v282
    %v284 = vrot.slane %v283, 1
    %v285 = vadd.f32 %v283, %v284
    %v286 = vrcp.pop %v277
    %v287 = vmul.f32 %v263, %v286
    %v288 = vrcp.pop %v285
    %v289 = vmul.f32 %v265, %v288
    %290 = vst [vmem:[#allocation2] sm:$0xff] %v287
    %291 = vst [vmem:[#allocation2 + $0x8] sm:$0xff] %v289
    // Predicated region
    $region14: #{tpu_custom_call.1} parent=1 // pred_check
      _
    $region15: #{tpu_custom_call.1} parent=1 // pred_check_branch
      %293 = sbr.rel (0) target = $region17
    $region16: #{tpu_custom_call.1} parent=1 // pred_region
      %s295 = ssub.s32 256, 256
      %296 = vsyncadd [#allocation3], %s295
      %s298 = sshll.u32 [#allocation2], 4
      %s299 = int_to_ptr.vmem [resolvable:$true] %s298
      %301 = dma.vmem_to_hbm [thread:$0]  %s299, 256, %s3, [#allocation3]
    $region17: #{tpu_custom_call.1} parent=1 // pred_fallthru
      _
    // Predicated region
    $region18: #{tpu_custom_call.1} parent=1 // pred_check
      _
    $region19: #{tpu_custom_call.1} parent=1 // pred_check_branch
      %303 = sbr.rel (0) target = $region21
    $region20: #{tpu_custom_call.1} parent=1 // pred_region
      %304 = dma.done [#allocation3], 256
    $region21: #{tpu_custom_call.1} parent=1 // pred_fallthru
      _
    %305 = vsyncpa [#allocation3], 1

</llo_original>
